<compile_context>
chip_gen: v6e
topology: v6e:2x2x1
jax: 0.10.0
libtpu: 0.0.40
codegen_flags: <defaults>
</compile_context>

<pallas_src>
import functools

import jax
import jax.numpy as jnp
from jax.experimental import pallas as pl
from jax.experimental.pallas import tpu as pltpu


def _normal_dist_kernel(x_ref, w_ref, b_ref, logstd_ref, out_ref):
    A = w_ref.shape[1]

    # MXU matmul with f32 accumulation regardless of the input dtype.
    mean = jnp.dot(x_ref[...], w_ref[...], preferred_element_type=jnp.float32)
    mean = mean + b_ref[...].astype(jnp.float32)            # (1, A) broadcasts

    # std is batch-invariant: one EUP pass on the (1, A) row only.
    std_row = jnp.exp(logstd_ref[...].astype(jnp.float32))  # (1, A)

    # Direct slice stores -- no concatenate, no extra VMEM copy.
    out_ref[:, :A] = mean.astype(out_ref.dtype)
    out_ref[:, A:] = jnp.broadcast_to(std_row, mean.shape).astype(out_ref.dtype)


def prepare_params(weight, bias, log_std):
    """One-time layout prep (PyTorch (A, F) weight -> (F, A); rows for bias/log_std).

    Call this once at init; do NOT call per forward.
    """
    A, _ = weight.shape
    return weight.T, bias.reshape(1, A), log_std.reshape(1, A)


@functools.partial(jax.jit, static_argnames=("block_b", "matmul_dtype"))
def normal_distribution_forward(x, w_t, b_row, ls_row, *,
                                block_b=1024, matmul_dtype=None):
    """x: (B, F); w_t: (F, A); b_row: (1, A); ls_row: (1, A) -> (B, 2A)."""
    B, F = x.shape
    A = w_t.shape[1]
    out_dtype = x.dtype

    if matmul_dtype is not None:
        # Halve HBM read bytes (mem-bound at large B); accumulation stays f32.
        x = x.astype(matmul_dtype)
        w_t = w_t.astype(matmul_dtype)

    # Batch tile: full batch for small B (single grid step), otherwise block_b
    # rows per step (block_b is a multiple of 8, satisfying the (8,128) rule;
    # a partial trailing block is handled by Pallas boundary masking).
    TB = B if B <= block_b else block_b
    grid = (pl.cdiv(B, TB),)

    return pl.pallas_call(
        _normal_dist_kernel,
        out_shape=jax.ShapeDtypeStruct((B, 2 * A), out_dtype),
        grid=grid,
        in_specs=[
            pl.BlockSpec((TB, F), lambda i: (i, 0)),   # batch-tiled activations
            pl.BlockSpec((F, A), lambda i: (0, 0)),    # weight resident in VMEM
            pl.BlockSpec((1, A), lambda i: (0, 0)),    # bias resident
            pl.BlockSpec((1, A), lambda i: (0, 0)),    # log_std resident
        ],
        out_specs=pl.BlockSpec((TB, 2 * A), lambda i: (i, 0)),
        compiler_params=pltpu.CompilerParams(
            dimension_semantics=("parallel",),         # shard batch across TCs (v7x)
        ),
    )(x, w_t, b_row, ls_row)


if __name__ == "__main__":
    key = jax.random.PRNGKey(0)
    k_x, k_w, k_b = jax.random.split(key, 3)

    batch = 8
    in_features = 32
    n_action_values = 16

    x = jax.random.normal(k_x, (batch, in_features), dtype=jnp.float32)
    # Deterministic synthetic parameters (nn.Linear-like scale).
    bound = 1.0 / jnp.sqrt(in_features)
    weight = jax.random.uniform(
        k_w, (n_action_values, in_features), dtype=jnp.float32,
        minval=-bound, maxval=bound)
    bias = jax.random.uniform(
        k_b, (n_action_values,), dtype=jnp.float32,
        minval=-bound, maxval=bound)
    # PyTorch initializes policy_std to zeros (std == 1.0 everywhere).
    log_std = jnp.zeros((1, n_action_values), dtype=jnp.float32)

    # One-time parameter layout prep (not paid per forward).
    w_t, b_row, ls_row = prepare_params(weight, bias, log_std)

    out = normal_distribution_forward(x, w_t, b_row, ls_row)
    out = jax.block_until_ready(out)

    # Reference check in plain JAX.
    ref_mean = x @ weight.T + bias
    ref_std = jnp.exp(jnp.broadcast_to(log_std, ref_mean.shape))
    ref = jnp.concatenate([ref_mean, ref_std], axis=-1)
    assert out.shape == (batch, 2 * n_action_values)
    assert jnp.allclose(out, ref, atol=1e-5, rtol=1e-5)

    print("KERNEL_OK")
</pallas_src>

<mosaic_0001>
module attributes {stable_mosaic.version = 11 : i64} {
  func.func @_normal_dist_kernel(%arg0: i32, %arg1: memref<8x32xf32, #tpu.memory_space<vmem>>, %arg2: memref<32x16xf32, #tpu.memory_space<vmem>>, %arg3: memref<1x16xf32, #tpu.memory_space<vmem>>, %arg4: memref<1x16xf32, #tpu.memory_space<vmem>>, %arg5: memref<8x32xf32, #tpu.memory_space<vmem>>) attributes {dimension_semantics = [#tpu.dimension_semantics<parallel>], iteration_bounds = array<i64: 1>, scalar_prefetch = 0 : i64, scratch_operands = 0 : i64, tpu.core_type = #tpu.core_type<tc>, window_params = [{transform_indices = @transform_0, window_bounds = array<i64: 8, 32>}, {pipeline_mode = #tpu.pipeline_mode<synchronous>, transform_indices = @transform_1, window_bounds = array<i64: 32, 16>}, {pipeline_mode = #tpu.pipeline_mode<synchronous>, transform_indices = @transform_2, window_bounds = array<i64: 1, 16>}, {pipeline_mode = #tpu.pipeline_mode<synchronous>, transform_indices = @transform_3, window_bounds = array<i64: 1, 16>}, {transform_indices = @transform_4, window_bounds = array<i64: 8, 32>}]} {
    %c0 = arith.constant 0 : index
    %c0_0 = arith.constant 0 : index
    %0 = vector.load %arg1[%c0, %c0_0] : memref<8x32xf32, #tpu.memory_space<vmem>>, vector<8x32xf32>
    %c0_1 = arith.constant 0 : index
    %c0_2 = arith.constant 0 : index
    %1 = vector.load %arg2[%c0_1, %c0_2] : memref<32x16xf32, #tpu.memory_space<vmem>>, vector<32x16xf32>
    %cst = arith.constant dense<0.000000e+00> : vector<8x16xf32>
    %2 = tpu.matmul %0, %1, %cst {dimension_numbers = #tpu.dot_dimension_numbers<[1], [0], [0], [1], [0, 0, 1, 1], [], []>} : vector<8x32xf32>, vector<32x16xf32>, vector<8x16xf32> -> vector<8x16xf32>
    %c0_3 = arith.constant 0 : index
    %c0_4 = arith.constant 0 : index
    %3 = vector.load %arg3[%c0_3, %c0_4] : memref<1x16xf32, #tpu.memory_space<vmem>>, vector<1x16xf32>
    %4 = vector.broadcast %3 : vector<1x16xf32> to vector<8x16xf32>
    %5 = arith.addf %2, %4 : vector<8x16xf32>
    %c0_5 = arith.constant 0 : index
    %c0_6 = arith.constant 0 : index
    %6 = vector.load %arg4[%c0_5, %c0_6] : memref<1x16xf32, #tpu.memory_space<vmem>>, vector<1x16xf32>
    %7 = math.exp %6 : vector<1x16xf32>
    %c0_7 = arith.constant 0 : index
    %c0_8 = arith.constant 0 : index
    %8 = vector.load %arg5[%c0_7, %c0_8] : memref<8x32xf32, #tpu.memory_space<vmem>>, vector<8x16xf32>
    tpu.vector_store %arg5[%c0_7, %c0_8], %5 {strides = array<i32>} : memref<8x32xf32, #tpu.memory_space<vmem>>, vector<8x16xf32>,
    %9 = vector.shape_cast %7 : vector<1x16xf32> to vector<1x16xf32>
    %10 = vector.broadcast %9 : vector<1x16xf32> to vector<8x16xf32>
    %c0_9 = arith.constant 0 : index
    %c16 = arith.constant 16 : index
    %11 = vector.load %arg5[%c0_9, %c16] : memref<8x32xf32, #tpu.memory_space<vmem>>, vector<8x16xf32>
    tpu.vector_store %arg5[%c0_9, %c16], %10 {strides = array<i32>} : memref<8x32xf32, #tpu.memory_space<vmem>>, vector<8x16xf32>,
    return
  }
  func.func @transform_0(%arg0: i32) -> (i32, i32) {
    %c0_i32 = arith.constant 0 : i32
    %c0_i32_0 = arith.constant 0 : i32
    return %arg0, %c0_i32 : i32, i32
  }
  func.func @transform_1(%arg0: i32) -> (i32, i32) {
    %c0_i32 = arith.constant 0 : i32
    %c0_i32_0 = arith.constant 0 : i32
    %c0_i32_1 = arith.constant 0 : i32
    return %c0_i32, %c0_i32_0 : i32, i32
  }
  func.func @transform_2(%arg0: i32) -> (i32, i32) {
    %c0_i32 = arith.constant 0 : i32
    %c0_i32_0 = arith.constant 0 : i32
    %c0_i32_1 = arith.constant 0 : i32
    return %c0_i32, %c0_i32_0 : i32, i32
  }
  func.func @transform_3(%arg0: i32) -> (i32, i32) {
    %c0_i32 = arith.constant 0 : i32
    %c0_i32_0 = arith.constant 0 : i32
    %c0_i32_1 = arith.constant 0 : i32
    return %c0_i32, %c0_i32_0 : i32, i32
  }
  func.func @transform_4(%arg0: i32) -> (i32, i32) {
    %c0_i32 = arith.constant 0 : i32
    %c0_i32_0 = arith.constant 0 : i32
    return %arg0, %c0_i32 : i32, i32
  }
}

</mosaic_0001>

<llo_original>
// kernel: normal_distribution_forward.1
$region0: #{normal_distribution_forward.1}
  #allocation0 [shape = 'u32[]', space=smem, size = 0x4, offset = 0x4, fixed_abs, tag = 'smem constant byte address 0x4 - core index']
  #allocation1 [shape = 'u32[144,128]{1,0:T(1,128)}', space=vmem, size = 0x12000, scoped, tag = 'internal scratch']
  %s0 = inlined_call_operand.vmem [shape: f32[8,32], index: 0, kind: input, shape index: {}]
  %s1 = inlined_call_operand.vmem [shape: f32[32,16], index: 1, kind: input, shape index: {}]
  %s2 = inlined_call_operand.vmem [shape: f32[1,16], index: 2, kind: input, shape index: {}]
  %s3 = inlined_call_operand.vmem [shape: f32[1,16], index: 3, kind: input, shape index: {}]
  %s4 = inlined_call_operand.hbm [shape: f32[8,32], index: 4, kind: output, shape index: {}]
  %s5 = sld [smem:[#allocation0]]
  $region26: #{normal_distribution_forward.1} parent=0
    _
  %s7 = ssub.s32 1, %s5
  %s8 = scalar_select 0, %s7, %s5
  $region1: #{normal_distribution_forward.1} parent=0
    #allocation2 [shape = 'u8[4096]{0}', space=vmem, size = 0x1000, scoped, tag = 'output window, operand 0, single buffered']
    #allocation3 [shape = 's32[1]{0}', space=sflag, size = 0x4, scoped, tag = 'scoped memory for normal_distribution_forward.1']
    %9 = vsyncpa [#allocation3], 0
    // Predicated region
    $region2: #{normal_distribution_forward.1} parent=1 // pred_check
      _
    $region3: #{normal_distribution_forward.1} parent=1 // pred_check_branch
      %11 = sbr.rel (0) target = $region5
    $region4: #{normal_distribution_forward.1} parent=1 // pred_region
      _
    $region5: #{normal_distribution_forward.1} parent=1 // pred_fallthru
      _
    // Predicated region
    $region6: #{normal_distribution_forward.1} parent=1 // pred_check
      _
    $region7: #{normal_distribution_forward.1} parent=1 // pred_check_branch
      %13 = sbr.rel (0) target = $region9
    $region8: #{normal_distribution_forward.1} parent=1 // pred_region
      _
    $region9: #{normal_distribution_forward.1} parent=1 // pred_fallthru
      _
    // Predicated region
    $region10: #{normal_distribution_forward.1} parent=1 // pred_check
      _
    $region11: #{normal_distribution_forward.1} parent=1 // pred_check_branch
      %15 = sbr.rel (0) target = $region13
    $region12: #{normal_distribution_forward.1} parent=1 // pred_region
      _
    $region13: #{normal_distribution_forward.1} parent=1 // pred_fallthru
      _
    // Predicated region
    $region14: #{normal_distribution_forward.1} parent=1 // pred_check
      _
    $region15: #{normal_distribution_forward.1} parent=1 // pred_check_branch
      %17 = sbr.rel (0) target = $region17
    $region16: #{normal_distribution_forward.1} parent=1 // pred_region
      _
    $region17: #{normal_distribution_forward.1} parent=1 // pred_fallthru
      _
    %v18 = vld [vmem:[%s0] sm:$0xff]
    %v19 = vld [vmem:[%s1] sm:$0xff]
    %v20 = vld [vmem:[%s1 + $0x8] sm:$0xff]
    %v21 = vld [vmem:[%s1 + $0x10] sm:$0xff]
    %v22 = vld [vmem:[%s1 + $0x18] sm:$0xff]
    %v23 = vld [vmem:[%s2] sm:$0x1]
    %v25 = vlaneseq
    %v26 = vshrl.u32 %v25, 7
    %v27 = vsub.s32 0, %v26
    %v28 = vrot.slane %v23, %v27
    %vm30 = vcmask 261120
    %v32 = vsel %vm30, %v18, 0
    %34 = vmatprep.subr.mxu0 0.0
    %35 = vmatpush1.msra.mxu0 0.0
    %36 = vmatprep.subr.mxu0 0.0
    %37 = vmatpush1.msra.mxu0 0.0
    %38 = vmatprep.subr.mxu0 0.0
    %39 = vmatpush1.msra.mxu0 0.0
    %40 = vmatprep.subr.mxu0 0.0
    %41 = vmatpush1.msra.mxu0 0.0
    %42 = vmatprep.subr.mxu0 0.0
    %43 = vmatpush1.msra.mxu0 0.0
    %44 = vmatprep.subr.mxu0 0.0
    %45 = vmatpush1.msra.mxu0 0.0
    %46 = vmatprep.subr.mxu0 0.0
    %47 = vmatpush1.msra.mxu0 0.0
    %48 = vmatprep.subr.mxu0 0.0
    %49 = vmatpush1.msra.mxu0 0.0
    %50 = vmatprep.subr.mxu0 0.0
    %51 = vmatpush1.msra.mxu0 0.0
    %52 = vmatprep.subr.mxu0 0.0
    %53 = vmatpush1.msra.mxu0 0.0
    %54 = vmatprep.subr.mxu0 0.0
    %55 = vmatpush1.msra.mxu0 0.0
    %56 = vmatprep.subr.mxu0 0.0
    %57 = vmatpush1.msra.mxu0 0.0
    %58 = vmatprep.subr.mxu0 0.0
    %59 = vmatpush1.msra.mxu0 %v22
    %60 = vmatprep.subr.mxu0 0.0
    %61 = vmatpush1.msra.mxu0 %v21
    %62 = vmatprep.subr.mxu0 0.0
    %63 = vmatpush1.msra.mxu0 %v20
    %64 = vmatprep.subr.mxu0 0.0
    %65 = vmatpush1.msra.mxu0 %v19
    %66 = vmatprep.subr.mxu0 0.0
    %67 = vmatpush2.msra.mxu0 0.0
    %68 = vmatprep.subr.mxu0 0.0
    %69 = vmatpush2.msra.mxu0 0.0
    %70 = vmatprep.subr.mxu0 0.0
    %71 = vmatpush2.msra.mxu0 0.0
    %72 = vmatprep.subr.mxu0 0.0
    %73 = vmatpush2.msra.mxu0 0.0
    %74 = vmatprep.subr.mxu0 0.0
    %75 = vmatpush2.msra.mxu0 0.0
    %76 = vmatprep.subr.mxu0 0.0
    %77 = vmatpush2.msra.mxu0 0.0
    %78 = vmatprep.subr.mxu0 0.0
    %79 = vmatpush2.msra.mxu0 0.0
    %80 = vmatprep.subr.mxu0 0.0
    %81 = vmatpush2.msra.mxu0 0.0
    %82 = vmatprep.subr.mxu0 0.0
    %83 = vmatpush2.msra.mxu0 0.0
    %84 = vmatprep.subr.mxu0 0.0
    %85 = vmatpush2.msra.mxu0 0.0
    %86 = vmatprep.subr.mxu0 0.0
    %87 = vmatpush2.msra.mxu0 0.0
    %88 = vmatprep.subr.mxu0 0.0
    %89 = vmatpush2.msra.mxu0 0.0
    %90 = vmatprep.subr.mxu0 0.0
    %91 = vmatpush2.msra.mxu0 0.0
    %92 = vmatprep.subr.mxu0 0.0
    %93 = vmatpush2.msra.mxu0 0.0
    %94 = vmatprep.subr.mxu0 0.0
    %95 = vmatpush2.msra.mxu0 0.0
    %96 = vmatprep.subr.mxu0 0.0
    %97 = vmatpush2.msra.mxu0 0.0
    %98 = vmatprep.mubr.f32.mxu0 0.0
    %99 = vmatmul.mubr.f32.gmra.mxu0 %v32
    %v100 = vpop.f32.mrf.mxu0
    %v101 = vadd.f32 %v28, %v100
    %v102 = vpop.f32.mrf.mxu0
    %103 = vdwg.mxu0
    %v104 = vld [vmem:[%s3] sm:$0x1]
    %v105 = vmul.f32 %v104, 1.442695
    %v106 = vpow.pop %v105
    %vm107 = vcmask 130048
    %108 = vst.msk [vmem:[#allocation2] sm:$0xff] %vm107, %v101
    %v110 = vlaneseq
    %v111 = vshrl.u32 %v110, 7
    %v112 = vsub.s32 0, %v111
    %v113 = vrot.slane %v106, %v112
    %114 = vrot.lane.b32.xlu0 %v113, 16
    %v115 = vpop.permute.xlu0 %114
    %vm117 = vcmask 261248
    %118 = vst.msk [vmem:[#allocation2] sm:$0xff] %vm117, %v115
    // Predicated region
    $region18: #{normal_distribution_forward.1} parent=1 // pred_check
      _
    $region19: #{normal_distribution_forward.1} parent=1 // pred_check_branch
      %120 = sbr.rel (0) target = $region21
    $region20: #{normal_distribution_forward.1} parent=1 // pred_region
      %s122 = ssub.s32 128, 128
      %123 = vsyncadd [#allocation3], %s122
      %s125 = sshll.u32 [#allocation2], 4
      %s126 = int_to_ptr.vmem [resolvable:$true] %s125
      %128 = dma.vmem_to_hbm [thread:$0]  %s126, 128, %s4, [#allocation3]
    $region21: #{normal_distribution_forward.1} parent=1 // pred_fallthru
      _
    // Predicated region
    $region22: #{normal_distribution_forward.1} parent=1 // pred_check
      _
    $region23: #{normal_distribution_forward.1} parent=1 // pred_check_branch
      %130 = sbr.rel (0) target = $region25
    $region24: #{normal_distribution_forward.1} parent=1 // pred_region
      %131 = dma.done [#allocation3], 128
    $region25: #{normal_distribution_forward.1} parent=1 // pred_fallthru
      _
    %132 = vsyncpa [#allocation3], 1

</llo_original>
